<compile_context>
chip_gen: v7x
topology: tpu7x:2x2x1
jax: 0.10.0
libtpu: 0.0.40
codegen_flags: <defaults>
</compile_context>

<pallas_src>
import jax
import jax.numpy as jnp
from jax.experimental import pallas as pl
from jax.experimental.pallas import tpu as pltpu


_LANE = 128
_TARGET_TILE_BYTES = 6 << 20      # per pipeline buffer (~24 MiB working set total)
_VMEM_LIMIT_BYTES = 48 << 20      # fits v5e/v6e (128 MiB) and v7x (64 MiB) VMEM


def _sublane_quantum(itemsize):
    # f32 -> 8, bf16 -> 16, int8/fp8 -> 32 (sub-32-bit dtypes pack along sublanes).
    return max(8, 32 // max(1, itemsize))


def _cdiv(a, b):
    return -(-a // b)


def _choose_tiles(rows, cols, itemsize, sub):
    """Pick (tr, tc) so each pipeline buffer is ~_TARGET_TILE_BYTES."""
    # Lane (last-dim) tile: full dim when it fits (always legal), otherwise the
    # widest multiple of 128 under the byte budget (one masked edge block max).
    lane_cap = max(_LANE, (_TARGET_TILE_BYTES // (sub * itemsize)) // _LANE * _LANE)
    tc = cols if cols <= lane_cap else lane_cap

    # Sublane (row) tile: fill the byte budget, multiple of the dtype quantum.
    rows_pad = _cdiv(rows, sub) * sub
    if rows <= sub:
        tr = rows                                   # full dim (legal even if < 8)
    else:
        tr = _TARGET_TILE_BYTES // (tc * itemsize)
        tr = max(sub, (tr // sub) * sub)
        tr = min(tr, rows_pad)

    # Large slabs: aim for >= 8 blocks total (>= 4 per TensorCore on v7x) so each
    # core has enough steps for the double-buffered pipeline to hide its DMAs.
    slab_bytes = rows * cols * itemsize
    if slab_bytes > (16 << 20) and rows > sub:
        j_blocks = _cdiv(cols, tc)
        need_i = _cdiv(8, j_blocks)
        if need_i > 1:
            tr_cap = (rows_pad // need_i) // sub * sub
            if tr_cap >= sub:
                tr = min(tr, tr_cap)
    return tr, tc


def _shared_slab(total, itemsize, sub):
    """Factor a flat length into a lane-dense (R, L) slab for shared alpha."""
    if total % _LANE != 0:
        return 1, total                              # tiny/odd input: one wide row
    max_l = min(total, max(_LANE, _TARGET_TILE_BYTES // (sub * itemsize)))
    best_key, best = None, None
    for lane in range(_LANE, max_l + 1, _LANE):
        if total % lane:
            continue
        r = total // lane
        key = (r % sub == 0, r >= sub, lane)         # prefer full sublanes, then width
        if best_key is None or key > best_key:
            best_key, best = key, (r, lane)
    if best is None:
        return 1, total
    return best


def _prelu_scalar_kernel(a_ref, x_ref, o_ref):
    # a_ref: (1,) f32 scalar in SMEM; x_ref/o_ref: (TR, TC) VMEM tiles.
    x = x_ref[...]
    a = a_ref[0].astype(x.dtype)
    o_ref[...] = jnp.where(x > 0, x, a * x)


def _prelu_vec_kernel(x_ref, a_ref, o_ref):
    # a_ref is either (TR, 1) (per-row alpha) or (1, TC) (per-lane alpha);
    # broadcasting handles both.
    x = x_ref[...]
    o_ref[...] = jnp.where(x > 0, x, a_ref[...] * x)


def my_prelu(x, alpha):
    """PReLU forward matching torch.nn.functional.prelu.

    x:     (N, C, *spatial) tensor
    alpha: (num_parameters,), num_parameters in {1, C}
    """
    orig_shape = x.shape
    alpha = alpha.reshape(-1)
    num_params = alpha.shape[0]
    itemsize = jnp.dtype(x.dtype).itemsize
    sub = _sublane_quantum(itemsize)
    compiler_params = pltpu.CompilerParams(
        dimension_semantics=("parallel", "parallel"),
        vmem_limit_bytes=_VMEM_LIMIT_BYTES,
    )

    if num_params == 1:
        # ---- shared alpha: scalar via SMEM, lane-dense re-factored slab ----
        total = 1
        for d in orig_shape:
            total *= d
        rows, cols = _shared_slab(total, itemsize, sub)
        x2d = x.reshape(rows, cols)
        tr, tc = _choose_tiles(rows, cols, itemsize, sub)
        grid = (_cdiv(rows, tr), _cdiv(cols, tc))
        alpha_smem = alpha.astype(jnp.float32)       # 32-bit scalar for SMEM

        out2d = pl.pallas_call(
            _prelu_scalar_kernel,
            out_shape=jax.ShapeDtypeStruct((rows, cols), x.dtype),
            grid_spec=pltpu.PrefetchScalarGridSpec(
                num_scalar_prefetch=0,
                grid=grid,
                in_specs=[
                    pl.BlockSpec(memory_space=pltpu.MemorySpace.SMEM),
                    pl.BlockSpec((tr, tc), lambda i, j: (i, j)),
                ],
                out_specs=pl.BlockSpec((tr, tc), lambda i, j: (i, j)),
            ),
            compiler_params=compiler_params,
            cost_estimate=pl.CostEstimate(
                flops=2 * rows * cols,
                transcendentals=0,
                bytes_accessed=2 * rows * cols * itemsize,
            ),
        )(alpha_smem, x2d)
        return out2d.reshape(orig_shape)

    # ---- per-channel alpha: num_parameters == C == x.shape[1] ----
    assert len(orig_shape) >= 2 and num_params == orig_shape[1], \
        "per-channel PReLU requires alpha of size C = x.shape[1]"
    n, c = orig_shape[0], orig_shape[1]
    spatial = 1
    for d in orig_shape[2:]:
        spatial *= d
    alpha = alpha.astype(x.dtype)

    if spatial % _LANE == 0:
        # (N*C, H*W) slab: per-row alpha column, one (tr, 1) block per row tile.
        rows, cols = n * c, spatial
        x2d = x.reshape(rows, cols)
        a2d = jnp.tile(alpha, (n,)).reshape(rows, 1)
        tr, tc = _choose_tiles(rows, cols, itemsize, sub)
        a_spec = pl.BlockSpec((tr, 1), lambda i, j: (i, 0))
    else:
        # Small / odd spatial (< 128 or not a multiple of 128): lane-dense
        # (N, C*H*W) slab with a per-lane alpha row so stores stay wide.
        rows, cols = n, c * spatial
        x2d = x.reshape(rows, cols)
        a2d = jnp.repeat(alpha, spatial).reshape(1, cols)
        tr, tc = _choose_tiles(rows, cols, itemsize, sub)
        a_spec = pl.BlockSpec((1, tc), lambda i, j: (0, j))

    grid = (_cdiv(rows, tr), _cdiv(cols, tc))

    out2d = pl.pallas_call(
        _prelu_vec_kernel,
        out_shape=jax.ShapeDtypeStruct((rows, cols), x.dtype),
        grid_spec=pltpu.PrefetchScalarGridSpec(
            num_scalar_prefetch=0,
            grid=grid,
            in_specs=[
                pl.BlockSpec((tr, tc), lambda i, j: (i, j)),
                a_spec,
            ],
            out_specs=pl.BlockSpec((tr, tc), lambda i, j: (i, j)),
        ),
        compiler_params=compiler_params,
        cost_estimate=pl.CostEstimate(
            flops=2 * rows * cols,
            transcendentals=0,
            bytes_accessed=2 * rows * cols * itemsize + a2d.size * itemsize,
        ),
    )(x2d, a2d)
    return out2d.reshape(orig_shape)


if __name__ == "__main__":
    key = jax.random.PRNGKey(0)
    N, C, H, W = 2, 4, 16, 16
    x = jax.random.normal(key, (N, C, H, W), dtype=jnp.float32)

    init = 0.25

    # num_parameters == C (per-channel alpha), as in MyPReLU(C)
    alpha_c = jnp.full((C,), init, dtype=jnp.float32)
    out_c = jax.block_until_ready(my_prelu(x, alpha_c))
    ref_c = jnp.where(x > 0, x, alpha_c.reshape(1, C, 1, 1) * x)
    assert out_c.shape == x.shape and out_c.dtype == x.dtype
    assert jnp.allclose(out_c, ref_c, atol=1e-6, rtol=1e-6)

    # num_parameters == 1 (default MyPReLU())
    alpha_1 = jnp.full((1,), init, dtype=jnp.float32)
    out_1 = jax.block_until_ready(my_prelu(x, alpha_1))
    ref_1 = jnp.where(x > 0, x, init * x)
    assert out_1.shape == x.shape and out_1.dtype == x.dtype
    assert jnp.allclose(out_1, ref_1, atol=1e-6, rtol=1e-6)

    print("KERNEL_OK")
</pallas_src>

<mosaic_0001>
module attributes {stable_mosaic.version = 11 : i64} {
  func.func @_prelu_vec_kernel(%arg0: i32, %arg1: i32, %arg2: memref<8x256xf32, #tpu.memory_space<vmem>>, %arg3: memref<8x1xf32, #tpu.memory_space<vmem>>, %arg4: memref<8x256xf32, #tpu.memory_space<vmem>>) attributes {dimension_semantics = [#tpu.dimension_semantics<parallel>, #tpu.dimension_semantics<parallel>], iteration_bounds = array<i64: 1, 1>, scalar_prefetch = 0 : i64, scratch_operands = 0 : i64, tpu.core_type = #tpu.core_type<tc>, window_params = [{transform_indices = @transform_0, window_bounds = array<i64: 8, 256>}, {transform_indices = @transform_1, window_bounds = array<i64: 8, 1>}, {transform_indices = @transform_2, window_bounds = array<i64: 8, 256>}]} {
    %c0 = arith.constant 0 : index
    %c0_0 = arith.constant 0 : index
    %0 = vector.load %arg2[%c0, %c0_0] : memref<8x256xf32, #tpu.memory_space<vmem>>, vector<8x256xf32>
    %cst = arith.constant 0.000000e+00 : f32
    %1 = vector.broadcast %cst : f32 to vector<8x256xf32>
    %2 = arith.cmpf ogt, %0, %1 : vector<8x256xf32>
    %c0_1 = arith.constant 0 : index
    %c0_2 = arith.constant 0 : index
    %3 = vector.load %arg3[%c0_1, %c0_2] : memref<8x1xf32, #tpu.memory_space<vmem>>, vector<8x1xf32>
    %4 = vector.broadcast %3 : vector<8x1xf32> to vector<8x256xf32>
    %5 = arith.mulf %4, %0 : vector<8x256xf32>
    %6 = arith.select %2, %0, %5 : vector<8x256xi1>, vector<8x256xf32>
    %c0_3 = arith.constant 0 : index
    %c0_4 = arith.constant 0 : index
    %7 = vector.load %arg4[%c0_3, %c0_4] : memref<8x256xf32, #tpu.memory_space<vmem>>, vector<8x256xf32>
    tpu.vector_store %arg4[%c0_3, %c0_4], %6 {strides = array<i32>} : memref<8x256xf32, #tpu.memory_space<vmem>>, vector<8x256xf32>,
    return
  }
  func.func @transform_0(%arg0: i32, %arg1: i32) -> (i32, i32) {
    %c0_i32 = arith.constant 0 : i32
    return %arg0, %arg1 : i32, i32
  }
  func.func @transform_1(%arg0: i32, %arg1: i32) -> (i32, i32) {
    %c0_i32 = arith.constant 0 : i32
    %c0_i32_0 = arith.constant 0 : i32
    return %arg0, %c0_i32 : i32, i32
  }
  func.func @transform_2(%arg0: i32, %arg1: i32) -> (i32, i32) {
    %c0_i32 = arith.constant 0 : i32
    return %arg0, %arg1 : i32, i32
  }
}

</mosaic_0001>

<llo_original>
// kernel: tpu_custom_call.1
$region0: #{tpu_custom_call.1}
  #allocation0 [shape = 'u32[]', space=smem, size = 0x4, offset = 0x4, fixed_abs, tag = 'smem constant byte address 0x4 - core index']
  #allocation1 [shape = 'u32[144,128]{1,0:T(1,128)}', space=vmem, size = 0x12000, scoped, tag = 'internal scratch']
  %s0 = inlined_call_operand.hbm [shape: f32[8,256], index: 0, kind: input, shape index: {}]
  %s1 = inlined_call_operand.vmem [shape: f32[8,1], index: 1, kind: input, shape index: {}]
  %s2 = inlined_call_operand.hbm [shape: f32[8,256], index: 2, kind: output, shape index: {}]
  %s3 = sld [smem:[#allocation0]]
  $region22: #{tpu_custom_call.1} parent=0
    _
  %s5 = ssub.s32 1, %s3
  %s6 = scalar_select 0, %s5, %s3
  $region1: #{tpu_custom_call.1} parent=0
    #allocation2 [shape = 'u8[8192]{0}', space=vmem, size = 0x2000, scoped, tag = 'input window, operand 0, single buffered']
    #allocation3 [shape = 's32[1]{0}', space=sflag, size = 0x4, scoped, tag = 'scoped memory for tpu_custom_call.1']
    #allocation4 [shape = 's32[1]{0}', space=sflag, size = 0x4, scoped, tag = 'scoped memory for tpu_custom_call.1']
    #allocation5 [shape = 'u8[8192]{0}', space=vmem, size = 0x2000, scoped, tag = 'output window, operand 0, single buffered']
    %7 = vsyncpa [#allocation3], 0
    %8 = vsyncpa [#allocation4], 0
    // Predicated region
    $region2: #{tpu_custom_call.1} parent=1 // pred_check
      _
    $region3: #{tpu_custom_call.1} parent=1 // pred_check_branch
      %10 = sbr.rel (0) target = $region5
    $region4: #{tpu_custom_call.1} parent=1 // pred_region
      %s12 = ssub.s32 256, 256
      %13 = vsyncadd [#allocation3], %s12
      %s15 = sshll.u32 [#allocation2], 4
      %s16 = int_to_ptr.vmem [resolvable:$true] %s15
      %18 = dma.hbm_to_vmem [thread:$0]  %s0, 256, %s16, [#allocation3]
    $region5: #{tpu_custom_call.1} parent=1 // pred_fallthru
      _
    // Predicated region
    $region6: #{tpu_custom_call.1} parent=1 // pred_check
      _
    $region7: #{tpu_custom_call.1} parent=1 // pred_check_branch
      %20 = sbr.rel (0) target = $region9
    $region8: #{tpu_custom_call.1} parent=1 // pred_region
      _
    $region9: #{tpu_custom_call.1} parent=1 // pred_fallthru
      _
    // Predicated region
    $region10: #{tpu_custom_call.1} parent=1 // pred_check
      _
    $region11: #{tpu_custom_call.1} parent=1 // pred_check_branch
      %22 = sbr.rel (0) target = $region13
    $region12: #{tpu_custom_call.1} parent=1 // pred_region
      %23 = dma.done [#allocation3], 256
    $region13: #{tpu_custom_call.1} parent=1 // pred_fallthru
      _
    %v24 = vld [vmem:[#allocation2] sm:$0xff]
    %v25 = vld [vmem:[#allocation2 + $0x8] sm:$0xff]
    %vm26 = vcmp.gt.f32.partialorder %v24, 0.0
    %vm27 = vcmp.gt.f32.partialorder %v25, 0.0
    %v28 = vld [vmem:[%s1] sm:$0xff]
    %30 = vset.pattern.permute.xlu0 0
    %31 = vperm.xlu0 %30, %v28
    %v32 = vpop.permute.xlu0 %31
    %v34 = vmul.f32 %v32, %v24
    %v35 = vmul.f32 %v32, %v25
    %v36 = vsel %vm26, %v24, %v34
    %v37 = vsel %vm27, %v25, %v35
    %38 = vst [vmem:[#allocation5] sm:$0xff] %v36
    %39 = vst [vmem:[#allocation5 + $0x8] sm:$0xff] %v37
    // Predicated region
    $region14: #{tpu_custom_call.1} parent=1 // pred_check
      _
    $region15: #{tpu_custom_call.1} parent=1 // pred_check_branch
      %41 = sbr.rel (0) target = $region17
    $region16: #{tpu_custom_call.1} parent=1 // pred_region
      %s43 = ssub.s32 256, 256
      %44 = vsyncadd [#allocation4], %s43
      %s46 = sshll.u32 [#allocation5], 4
      %s47 = int_to_ptr.vmem [resolvable:$true] %s46
      %49 = dma.vmem_to_hbm [thread:$0]  %s47, 256, %s2, [#allocation4]
    $region17: #{tpu_custom_call.1} parent=1 // pred_fallthru
      _
    // Predicated region
    $region18: #{tpu_custom_call.1} parent=1 // pred_check
      _
    $region19: #{tpu_custom_call.1} parent=1 // pred_check_branch
      %51 = sbr.rel (0) target = $region21
    $region20: #{tpu_custom_call.1} parent=1 // pred_region
      %52 = dma.done [#allocation4], 256
    $region21: #{tpu_custom_call.1} parent=1 // pred_fallthru
      _
    %53 = vsyncpa [#allocation3], 1
    %54 = vsyncpa [#allocation4], 1

</llo_original>
